<compile_context>
chip_gen: v5e
topology: v5e:2x2
jax: 0.10.0
libtpu: 0.0.40
codegen_flags: <defaults>
</compile_context>

<pallas_src>
import jax
import jax.numpy as jnp
from jax.experimental import pallas as pl
from jax.experimental.pallas import tpu as pltpu


_TARGET_BLOCK_BYTES = 4 << 20       # ~4 MiB per block (amortizes ~0.35 us/step)
_MAX_BLOCK_COLS = 8192              # lane-dim tile cap (multiple of 128)
_MIN_PALLAS_ELEMS = 8 * 1024        # below this a fused XLA clip wins
_VMEM_LIMIT_BYTES = 32 << 20        # 2x headroom over 4 x 4 MiB pipeline buffers

# Column choices for flattened views (largest lane-dense factor wins).
_FLAT_COL_CHOICES = (8192, 4096, 2048, 1024, 512, 256, 128)


def _sublane_multiple(itemsize: int) -> int:
    # f32 -> 8, bf16/f16 -> 16, int8/fp8 -> 32 (vreg packing along sublanes).
    return {4: 8, 2: 16, 1: 32}.get(itemsize, 8)


def _round_up(x: int, m: int) -> int:
    return -(-x // m) * m


def _clamp_kernel(bounds_ref, x_ref, o_ref):
    """bounds_ref: (2,) f32 in SMEM = [lo, hi]; x_ref/o_ref: VMEM tiles."""
    lo = bounds_ref[0].astype(x_ref.dtype)
    hi = bounds_ref[1].astype(x_ref.dtype)
    o_ref[...] = jnp.minimum(jnp.maximum(x_ref[...], lo), hi)


def _lane_view(x: jax.Array):
    """Zero-copy (R, C) view with C % 128 == 0, or None if impossible."""
    n = x.size
    if n % 128 != 0:
        return None
    if x.ndim >= 2 and x.shape[-1] % 128 == 0:
        c = x.shape[-1]                     # keep the natural trailing dim
    else:
        c = next(cc for cc in _FLAT_COL_CHOICES if n % cc == 0)
    return x.reshape(n // c, c)


def activation_pallas(x: jax.Array, a_max_n_boundary=(-5.0, 5.0), *,
                      donate: bool = False) -> jax.Array:
    """Clamp `x` element-wise to [a_max_n_boundary[0], a_max_n_boundary[1]]."""
    lo, hi = float(a_max_n_boundary[0]), float(a_max_n_boundary[1])
    n = x.size

    x2d = None
    if n >= _MIN_PALLAS_ELEMS and jnp.issubdtype(x.dtype, jnp.floating):
        x2d = _lane_view(x)
    if x2d is None:
        # Tiny / non-float / ragged inputs: fused XLA clip (2N bytes, no
        # launch overhead, no pad/slice/concat round trips).
        return jnp.clip(x, jnp.asarray(lo, x.dtype), jnp.asarray(hi, x.dtype))

    R, C = x2d.shape
    itemsize = jnp.dtype(x.dtype).itemsize
    sub = _sublane_multiple(itemsize)

    # --- lane-dim tiling (only split very wide rows) ----------------------
    bc = C if C <= _MAX_BLOCK_COLS else _MAX_BLOCK_COLS
    gc = pl.cdiv(C, bc)

    # --- sublane-dim tiling: byte-target sized, dtype-aligned --------------
    br = max(sub, (_TARGET_BLOCK_BYTES // (bc * itemsize)) // sub * sub)
    br = min(br, _round_up(R, sub))
    gr = pl.cdiv(R, br)

    # Guarantee >= 2 grid steps when possible (DMA/compute overlap everywhere,
    # and lets v7x shard the parallel axis across both TensorCores).
    if gr * gc < 2 and R >= 2 * sub:
        br = _round_up(-(-R // 2), sub)
        gr = pl.cdiv(R, br)

    bounds = jnp.asarray([lo, hi], dtype=jnp.float32)

    out2d = pl.pallas_call(
        _clamp_kernel,
        out_shape=jax.ShapeDtypeStruct((R, C), x.dtype),
        grid_spec=pl.GridSpec(
            grid=(gr, gc),
            in_specs=[
                pl.BlockSpec(memory_space=pltpu.MemorySpace.SMEM),     # lo/hi
                pl.BlockSpec((br, bc), lambda i, j: (i, j)),           # x tile
            ],
            out_specs=pl.BlockSpec((br, bc), lambda i, j: (i, j)),
        ),
        compiler_params=pltpu.CompilerParams(
            dimension_semantics=("parallel", "parallel"),
            vmem_limit_bytes=_VMEM_LIMIT_BYTES,
        ),
        cost_estimate=pl.CostEstimate(
            flops=2 * n,
            transcendentals=0,
            bytes_accessed=2 * n * itemsize,
        ),
        # Optionally write the clamp back into the input buffer (mirrors the
        # PyTorch in-place mutation; a real win when the caller donates x).
        input_output_aliases=({1: 0} if donate else {}),
    )(bounds, x2d)

    return out2d.reshape(x.shape)


if __name__ == "__main__":
    key = jax.random.PRNGKey(0)
    k1, k2, k3, k4, k5 = jax.random.split(key, 5)

    lo_d, hi_d = -5.0, 5.0       # module-default boundary
    lo_s, hi_s = 0.1, 2.5        # script-level a_max_n_boundary

    # 1) Tiny 1-D action vector (what the module's forward loops over):
    #    fused-clip fallback path, default bounds.
    x1 = jax.random.uniform(k1, (8,), jnp.float32, minval=-8.0, maxval=8.0)
    o1 = jax.block_until_ready(activation_pallas(x1, (lo_d, hi_d)))
    assert o1.shape == x1.shape and o1.dtype == x1.dtype
    assert bool(jnp.all(o1 == jnp.clip(x1, lo_d, hi_d)))

    # 2) Ragged mid-size 1-D (n % 128 != 0): fused-clip fallback.
    x2 = jax.random.uniform(k2, (20_000,), jnp.float32, minval=-8.0, maxval=8.0)
    o2 = jax.block_until_ready(activation_pallas(x2, (lo_s, hi_s)))
    assert bool(jnp.all(o2 == jnp.clip(x2, lo_s, hi_s)))

    # 3) Lane-aligned activation tensor (B, S, H, D): zero-copy Pallas path,
    #    multi-block grid, script-level bounds.
    x3 = jax.random.uniform(k3, (2, 8, 32, 128), jnp.float32,
                            minval=-8.0, maxval=8.0)
    o3 = jax.block_until_ready(activation_pallas(x3, (lo_s, hi_s)))
    assert o3.shape == x3.shape and o3.dtype == x3.dtype
    assert bool(jnp.all(o3 == jnp.clip(x3, lo_s, hi_s)))

    # 4) Flat 1-D, n % 128 == 0: flat zero-copy Pallas path + aliased output.
    x4 = jax.random.uniform(k4, (131_072,), jnp.float32, minval=-8.0, maxval=8.0)
    ref4 = jnp.clip(x4, lo_d, hi_d)
    o4 = jax.block_until_ready(activation_pallas(x4, (lo_d, hi_d), donate=True))
    assert o4.shape == x4.shape and o4.dtype == x4.dtype
    assert bool(jnp.all(o4 == ref4))

    # 5) bf16 input: exercises the dtype-aware sublane multiple (16) and
    #    bf16-rounded bounds.
    x5 = jax.random.uniform(k5, (64, 256), jnp.float32,
                            minval=-8.0, maxval=8.0).astype(jnp.bfloat16)
    o5 = jax.block_until_ready(activation_pallas(x5, (lo_s, hi_s)))
    ref5 = jnp.clip(x5, jnp.asarray(lo_s, jnp.bfloat16),
                    jnp.asarray(hi_s, jnp.bfloat16))
    assert o5.dtype == jnp.bfloat16
    assert bool(jnp.all(o5 == ref5))

    print("KERNEL_OK")
</pallas_src>

<mosaic_0001>
module attributes {stable_mosaic.version = 11 : i64} {
  func.func @_clamp_kernel(%arg0: i32, %arg1: i32, %arg2: memref<2xf32, #tpu.memory_space<smem>>, %arg3: memref<256x128xf32, #tpu.memory_space<vmem>>, %arg4: memref<256x128xf32, #tpu.memory_space<vmem>>) attributes {dimension_semantics = [#tpu.dimension_semantics<parallel>, #tpu.dimension_semantics<parallel>], iteration_bounds = array<i64: 2, 1>, scalar_prefetch = 0 : i64, scratch_operands = 0 : i64, tpu.core_type = #tpu.core_type<tc>, window_params = [{transform_indices = @transform_0, window_bounds = array<i64: 2>}, {transform_indices = @transform_1, window_bounds = array<i64: 256, 128>}, {transform_indices = @transform_2, window_bounds = array<i64: 256, 128>}]} {
    %c0 = arith.constant 0 : index
    %0 = memref.load %arg2[%c0] : memref<2xf32, #tpu.memory_space<smem>>
    %c1 = arith.constant 1 : index
    %1 = memref.load %arg2[%c1] : memref<2xf32, #tpu.memory_space<smem>>
    %c0_0 = arith.constant 0 : index
    %c0_1 = arith.constant 0 : index
    %2 = vector.load %arg3[%c0_0, %c0_1] : memref<256x128xf32, #tpu.memory_space<vmem>>, vector<256x128xf32>
    %3 = vector.broadcast %0 : f32 to vector<256x128xf32>
    %4 = arith.maximumf %2, %3 : vector<256x128xf32>
    %5 = vector.broadcast %1 : f32 to vector<256x128xf32>
    %6 = arith.minimumf %4, %5 : vector<256x128xf32>
    %c0_2 = arith.constant 0 : index
    %c0_3 = arith.constant 0 : index
    %7 = vector.load %arg4[%c0_2, %c0_3] : memref<256x128xf32, #tpu.memory_space<vmem>>, vector<256x128xf32>
    tpu.vector_store %arg4[%c0_2, %c0_3], %6 {strides = array<i32>} : memref<256x128xf32, #tpu.memory_space<vmem>>, vector<256x128xf32>,
    return
  }
  func.func @transform_0(%arg0: i32, %arg1: i32) -> i32 {
    %c0_i32 = arith.constant 0 : i32
    %c0_i32_0 = arith.constant 0 : i32
    return %c0_i32 : i32
  }
  func.func @transform_1(%arg0: i32, %arg1: i32) -> (i32, i32) {
    %c0_i32 = arith.constant 0 : i32
    return %arg0, %arg1 : i32, i32
  }
  func.func @transform_2(%arg0: i32, %arg1: i32) -> (i32, i32) {
    %c0_i32 = arith.constant 0 : i32
    return %arg0, %arg1 : i32, i32
  }
}

</mosaic_0001>

<llo_original>
// kernel: tpu_custom_call.1
$region0: #{tpu_custom_call.1}
  #allocation0 [shape = 'u32[]', space=smem, size = 0x4, offset = 0x4, fixed_abs, tag = 'smem constant byte address 0x4 - core index']
  #allocation1 [shape = 'u32[72,128]{1,0:T(1,128)}', space=vmem, size = 0x9000, scoped, tag = 'internal scratch']
  %s0 = inlined_call_operand.hbm [shape: f32[2], index: 0, kind: input, shape index: {}]
  %s1 = inlined_call_operand.hbm [shape: f32[512,128], index: 1, kind: input, shape index: {}]
  %s2 = inlined_call_operand.hbm [shape: f32[512,128], index: 2, kind: output, shape index: {}]
  %s3 = sld [smem:[#allocation0]]
  $region49: #{tpu_custom_call.1} parent=0
    _
  %s5 = ssub.s32 1, %s3
  %s6 = scalar_select 0, %s5, %s3
  $region1: #{tpu_custom_call.1} parent=0
    #allocation2 [shape = 'u8[512]{0}', space=smem, size = 0x200, scoped, tag = 'input window, operand 0, single buffered']
    #allocation3 [shape = 's32[2]{0}', space=sflag, size = 0x8, scoped, tag = 'scoped memory for tpu_custom_call.1']
    #allocation4 [shape = 's32[2]{0}', space=sflag, size = 0x8, scoped, tag = 'scoped memory for tpu_custom_call.1']
    #allocation5 [shape = 's32[2]{0}', space=sflag, size = 0x8, scoped, tag = 'scoped memory for tpu_custom_call.1']
    #allocation6 [shape = 'u8[262144]{0}', space=vmem, size = 0x40000, scoped, tag = 'input window, operand 1']
    #allocation7 [shape = 'u8[262144]{0}', space=vmem, size = 0x40000, scoped, tag = 'output window, operand 0']
    %7 = vsyncpa [#allocation5], 0
    %8 = vsyncpa [#allocation3], 0
    %s9 = scalar_lea.sflag [#allocation3], 1
    %10 = vsyncpa %s9, 0
    %11 = vsyncpa [#allocation4], 0
    %s12 = scalar_lea.sflag [#allocation4], 1
    %13 = vsyncpa %s12, 0
    loop: start=0, step=1, limit=4
    $region2: #{tpu_custom_call.1} parent=1 // loop_pre_header
      _
    $region3: #{tpu_custom_call.1} parent=1 // loop_header
      %s15 = sphi 0, %s19
      %p16 = scmp.ge.s32.totalorder %s15, 4
      %s22 = sphi 0, %s34
      %s23 = sphi 0, %s30
      %s24 = sphi 0, %s22
      %s25 = sphi 0, %s23
      %s26 = sphi 0, %s24
      %s27 = sphi 0, %s25
      %s35 = sphi 0, %s35
      %s37 = sphi 0, %s35
      %s38 = sphi 0, %s37
      %s52 = sphi 0, %s38
      %s60 = sphi 0, %s62
      %s63 = sphi 0, %s60
      %s64 = sphi 0, %s63
      %s80 = sphi 0, %s64
      %s88 = sphi 0, %s90
      %s91 = sphi 0, %s88
      %s92 = sphi 0, %s91
      %s108 = sphi 0, %s92
    $region4: #{tpu_custom_call.1} parent=1 // loop_header_branch
      %18 = sbr.rel (%p16) target = $region8
    $region5: #{tpu_custom_call.1} parent=1 // loop_body
      %s20 = ssub.s32 %s15, 1
      %s21 = ssub.s32 %s15, 2
      %s28 = sadd.s32 1, %s23
      %p29 = scmp.ge.s32.totalorder %s28, 1
      %s30 = scalar_select %p29, 0, %s28
      %s31 = sadd.s32 1, %s22
      %s32 = scalar_select %p29, %s31, %s22
      %p33 = scmp.ge.s32.totalorder %s32, 2
      %s34 = scalar_select %p33, 0, %s32
      %s36 = sadd.s32 %s35, 1
      %p39 = scmp.eq.s32.totalorder %s15, 1
      %p40 = scmp.ne.s32.totalorder %s35, %s37
      %p41 = scmp.eq.s32.totalorder %s15, 0
      %p42 = por %p40, %p41
      %p43 = scmp.ne.s32.totalorder %s35, %s37
      %p44 = scmp.eq.s32.totalorder %s20, 1
      %p45 = por %p43, %p44
      %p46 = scmp.ne.s32.totalorder %s37, %s38
      %p47 = scmp.eq.s32.totalorder %s20, 0
      %p48 = por %p46, %p47
      %p49 = scmp.ne.s32.totalorder %s37, %s38
      %p50 = scmp.eq.s32.totalorder %s21, 1
      %p51 = por %p49, %p50
      %p53 = scmp.ne.s32.totalorder %s38, %s52
      %p54 = scmp.eq.s32.totalorder %s21, 0
      %p55 = por %p53, %p54
      %s56 = ssub.s32 %s22, %s34
      %s57 = ssub.s32 %s23, %s30
      %s58 = sor.u32 %s56, %s57
      %p59 = scmp.eq.s32.totalorder %s58, 0
      %s61 = sadd.s32 %s60, 1
      %s62 = scalar_select %p59, %s60, %s61
      %p65 = pneg %p59
      %p66 = scmp.eq.s32.totalorder %s15, 1
      %p67 = por %p65, %p66
      %p68 = scmp.ne.s32.totalorder %s60, %s63
      %p69 = scmp.eq.s32.totalorder %s15, 0
      %p70 = por %p68, %p69
      %p71 = scmp.ne.s32.totalorder %s60, %s63
      %p72 = scmp.eq.s32.totalorder %s20, 1
      %p73 = por %p71, %p72
      %p74 = scmp.ne.s32.totalorder %s63, %s64
      %p75 = scmp.eq.s32.totalorder %s20, 0
      %p76 = por %p74, %p75
      %p77 = scmp.ne.s32.totalorder %s63, %s64
      %p78 = scmp.eq.s32.totalorder %s21, 1
      %p79 = por %p77, %p78
      %p81 = scmp.ne.s32.totalorder %s64, %s80
      %p82 = scmp.eq.s32.totalorder %s21, 0
      %p83 = por %p81, %p82
      %s84 = ssub.s32 %s22, %s34
      %s85 = ssub.s32 %s23, %s30
      %s86 = sor.u32 %s84, %s85
      %p87 = scmp.eq.s32.totalorder %s86, 0
      %s89 = sadd.s32 %s88, 1
      %s90 = scalar_select %p87, %s88, %s89
      %p93 = pneg %p87
      %p94 = scmp.eq.s32.totalorder %s15, 1
      %p95 = por %p93, %p94
      %p96 = scmp.ne.s32.totalorder %s88, %s91
      %p97 = scmp.eq.s32.totalorder %s15, 0
      %p98 = por %p96, %p97
      %p99 = scmp.ne.s32.totalorder %s88, %s91
      %p100 = scmp.eq.s32.totalorder %s20, 1
      %p101 = por %p99, %p100
      %p102 = scmp.ne.s32.totalorder %s91, %s92
      %p103 = scmp.eq.s32.totalorder %s20, 0
      %p104 = por %p102, %p103
      %p105 = scmp.ne.s32.totalorder %s91, %s92
      %p106 = scmp.eq.s32.totalorder %s21, 1
      %p107 = por %p105, %p106
      %p109 = scmp.ne.s32.totalorder %s92, %s108
      %p110 = scmp.eq.s32.totalorder %s21, 0
      %p111 = por %p109, %p110
      %p112 = scmp.le.s32.totalorder 1, %s15
      %p113 = scmp.lt.s32.totalorder %s15, 3
      %p114 = pnand %p112, %p113
      %p115 = pneg %p114
      // Predicated region
      $region9: #{tpu_custom_call.1} parent=5 // pred_check
        _
      $region10: #{tpu_custom_call.1} parent=5 // pred_check_branch
        %117 = sbr.rel (%p114) target = $region12
      $region11: #{tpu_custom_call.1} parent=5 // pred_region
        %s118 = ssub.s32 %s15, 1
        // Predicated region
        $region13: #{tpu_custom_call.1} parent=11 // pred_check
          %p119 = pneg %p48
        $region14: #{tpu_custom_call.1} parent=11 // pred_check_branch
          %121 = sbr.rel (%p119) target = $region16
        $region15: #{tpu_custom_call.1} parent=11 // pred_region
          %123 = vsyncadd [#allocation5], 0
          %s125 = sshll.u32 %s0, 4
          %s126 = int_to_ptr.hbm [resolvable:$true] %s125
          %128 = dma.hbm_to_smem %s126, 16, [#allocation2], [#allocation5]
        $region16: #{tpu_custom_call.1} parent=11 // pred_fallthru
          _
      $region12: #{tpu_custom_call.1} parent=5 // pred_fallthru
        _
      %p129 = scmp.lt.s32.totalorder %s15, 2
      // Predicated region
      $region17: #{tpu_custom_call.1} parent=5 // pred_check
        %p130 = pneg %p129
      $region18: #{tpu_custom_call.1} parent=5 // pred_check_branch
        %132 = sbr.rel (%p130) target = $region20
      $region19: #{tpu_custom_call.1} parent=5 // pred_region
        // Predicated region
        $region21: #{tpu_custom_call.1} parent=19 // pred_check
          %p133 = pneg %p70
        $region22: #{tpu_custom_call.1} parent=19 // pred_check_branch
          %135 = sbr.rel (%p133) target = $region24
        $region23: #{tpu_custom_call.1} parent=19 // pred_region
          %s136 = sand.u32 %s60, 1
          %s137 = scalar_lea.sflag [#allocation3], %s136
          %s138 = sand.u32 %s60, 1
          %s139 = smul.addr %s138, 256
          %s140 = scalar_lea.vmem [#allocation6], %s139
          %s141 = smul.u32 32, %s22
          %143 = vsyncadd %s137, 0
          %s144 = sadd.s32 %s23, %s141
          %s145 = smul.addr %s144, 8
          %s146 = scalar_lea.hbm %s1, %s145
          %s147 = sshll.u32 %s146, 4
          %s148 = int_to_ptr.hbm [resolvable:$true] %s147
          %s149 = sshll.u32 %s140, 4
          %s150 = int_to_ptr.vmem [resolvable:$true] %s149
          %155 = dma.hbm_to_vmem [thread:$0]  %s148, 4096, %s150, %s137, 128, 128, 8
        $region24: #{tpu_custom_call.1} parent=19 // pred_fallthru
          _
      $region20: #{tpu_custom_call.1} parent=5 // pred_fallthru
        _
      %p156 = scmp.le.s32.totalorder 1, %s15
      %p157 = scmp.lt.s32.totalorder %s15, 3
      %p158 = pnand %p156, %p157
      %p159 = pneg %p158
      // Predicated region
      $region25: #{tpu_custom_call.1} parent=5 // pred_check
        _
      $region26: #{tpu_custom_call.1} parent=5 // pred_check_branch
        %161 = sbr.rel (%p158) target = $region28
      $region27: #{tpu_custom_call.1} parent=5 // pred_region
        %s162 = ssub.s32 %s15, 1
        // Predicated region
        $region29: #{tpu_custom_call.1} parent=27 // pred_check
          %p163 = pneg %p48
        $region30: #{tpu_custom_call.1} parent=27 // pred_check_branch
          %165 = sbr.rel (%p163) target = $region32
        $region31: #{tpu_custom_call.1} parent=27 // pred_region
          %167 = dma.done [#allocation5], 16
        $region32: #{tpu_custom_call.1} parent=27 // pred_fallthru
          _
        %s168 = sand.u32 %s63, 1
        %s169 = scalar_lea.sflag [#allocation3], %s168
        %s170 = sand.u32 %s63, 1
        %s171 = smul.addr %s170, 256
        %s172 = scalar_lea.vmem [#allocation6], %s171
        // Predicated region
        $region33: #{tpu_custom_call.1} parent=27 // pred_check
          %p173 = pneg %p76
        $region34: #{tpu_custom_call.1} parent=27 // pred_check_branch
          %175 = sbr.rel (%p173) target = $region36
        $region35: #{tpu_custom_call.1} parent=27 // pred_region
          %177 = dma.done %s169, 4096
        $region36: #{tpu_custom_call.1} parent=27 // pred_fallthru
          _
        %178 = sfence
        %p179 = pneg %p48
        %p180 = pneg %p45
        %s181 = sand.u32 %s63, 1
        %s182 = scalar_lea.sflag [#allocation3], %s181
        %s183 = sand.u32 %s63, 1
        %s184 = smul.addr %s183, 256
        %s185 = scalar_lea.vmem [#allocation6], %s184
        %p186 = pneg %p76
        %p187 = pneg %p73
        %p188 = pneg %p104
        %p189 = pneg %p101
        %s190 = sand.u32 %s91, 1
        %s191 = scalar_lea.sflag [#allocation4], %s190
        %s192 = sand.u32 %s91, 1
        %s193 = smul.addr %s192, 256
        %s194 = scalar_lea.vmem [#allocation7], %s193
        %s195 = smul.u32 32, %s24
        %s196 = smul.u32 32, %s24
        %s197 = sld [smem:[#allocation2]]
        %s198 = sld [smem:[#allocation2 + $0x1]]
        %v199 = vld [vmem:[%s172] sm:$0xff]
        %v200 = vld [vmem:[%s172 + $0x8] sm:$0xff]
        %v201 = vld [vmem:[%s172 + $0x10] sm:$0xff]
        %v202 = vld [vmem:[%s172 + $0x18] sm:$0xff]
        %v203 = vld [vmem:[%s172 + $0x20] sm:$0xff]
        %v204 = vld [vmem:[%s172 + $0x28] sm:$0xff]
        %v205 = vld [vmem:[%s172 + $0x30] sm:$0xff]
        %v206 = vld [vmem:[%s172 + $0x38] sm:$0xff]
        %v207 = vld [vmem:[%s172 + $0x40] sm:$0xff]
        %v208 = vld [vmem:[%s172 + $0x48] sm:$0xff]
        %v209 = vld [vmem:[%s172 + $0x50] sm:$0xff]
        %v210 = vld [vmem:[%s172 + $0x58] sm:$0xff]
        %v211 = vld [vmem:[%s172 + $0x60] sm:$0xff]
        %v212 = vld [vmem:[%s172 + $0x68] sm:$0xff]
        %v213 = vld [vmem:[%s172 + $0x70] sm:$0xff]
        %v214 = vld [vmem:[%s172 + $0x78] sm:$0xff]
        %v215 = vld [vmem:[%s172 + $0x80] sm:$0xff]
        %v216 = vld [vmem:[%s172 + $0x88] sm:$0xff]
        %v217 = vld [vmem:[%s172 + $0x90] sm:$0xff]
        %v218 = vld [vmem:[%s172 + $0x98] sm:$0xff]
        %v219 = vld [vmem:[%s172 + $0xa0] sm:$0xff]
        %v220 = vld [vmem:[%s172 + $0xa8] sm:$0xff]
        %v221 = vld [vmem:[%s172 + $0xb0] sm:$0xff]
        %v222 = vld [vmem:[%s172 + $0xb8] sm:$0xff]
        %v223 = vld [vmem:[%s172 + $0xc0] sm:$0xff]
        %v224 = vld [vmem:[%s172 + $0xc8] sm:$0xff]
        %v225 = vld [vmem:[%s172 + $0xd0] sm:$0xff]
        %v226 = vld [vmem:[%s172 + $0xd8] sm:$0xff]
        %v227 = vld [vmem:[%s172 + $0xe0] sm:$0xff]
        %v228 = vld [vmem:[%s172 + $0xe8] sm:$0xff]
        %v229 = vld [vmem:[%s172 + $0xf0] sm:$0xff]
        %v230 = vld [vmem:[%s172 + $0xf8] sm:$0xff]
        %v231 = vstv %s197
        %v232 = vmax.f32 %v199, %v231
        %v233 = vmax.f32 %v200, %v231
        %v234 = vmax.f32 %v201, %v231
        %v235 = vmax.f32 %v202, %v231
        %v236 = vmax.f32 %v203, %v231
        %v237 = vmax.f32 %v204, %v231
        %v238 = vmax.f32 %v205, %v231
        %v239 = vmax.f32 %v206, %v231
        %v240 = vmax.f32 %v207, %v231
        %v241 = vmax.f32 %v208, %v231
        %v242 = vmax.f32 %v209, %v231
        %v243 = vmax.f32 %v210, %v231
        %v244 = vmax.f32 %v211, %v231
        %v245 = vmax.f32 %v212, %v231
        %v246 = vmax.f32 %v213, %v231
        %v247 = vmax.f32 %v214, %v231
        %v248 = vmax.f32 %v215, %v231
        %v249 = vmax.f32 %v216, %v231
        %v250 = vmax.f32 %v217, %v231
        %v251 = vmax.f32 %v218, %v231
        %v252 = vmax.f32 %v219, %v231
        %v253 = vmax.f32 %v220, %v231
        %v254 = vmax.f32 %v221, %v231
        %v255 = vmax.f32 %v222, %v231
        %v256 = vmax.f32 %v223, %v231
        %v257 = vmax.f32 %v224, %v231
        %v258 = vmax.f32 %v225, %v231
        %v259 = vmax.f32 %v226, %v231
        %v260 = vmax.f32 %v227, %v231
        %v261 = vmax.f32 %v228, %v231
        %v262 = vmax.f32 %v229, %v231
        %v263 = vmax.f32 %v230, %v231
        %v264 = vstv %s198
        %v265 = vmin.f32 %v232, %v264
        %v266 = vmin.f32 %v233, %v264
        %v267 = vmin.f32 %v234, %v264
        %v268 = vmin.f32 %v235, %v264
        %v269 = vmin.f32 %v236, %v264
        %v270 = vmin.f32 %v237, %v264
        %v271 = vmin.f32 %v238, %v264
        %v272 = vmin.f32 %v239, %v264
        %v273 = vmin.f32 %v240, %v264
        %v274 = vmin.f32 %v241, %v264
        %v275 = vmin.f32 %v242, %v264
        %v276 = vmin.f32 %v243, %v264
        %v277 = vmin.f32 %v244, %v264
        %v278 = vmin.f32 %v245, %v264
        %v279 = vmin.f32 %v246, %v264
        %v280 = vmin.f32 %v247, %v264
        %v281 = vmin.f32 %v248, %v264
        %v282 = vmin.f32 %v249, %v264
        %v283 = vmin.f32 %v250, %v264
        %v284 = vmin.f32 %v251, %v264
        %v285 = vmin.f32 %v252, %v264
        %v286 = vmin.f32 %v253, %v264
        %v287 = vmin.f32 %v254, %v264
        %v288 = vmin.f32 %v255, %v264
        %v289 = vmin.f32 %v256, %v264
        %v290 = vmin.f32 %v257, %v264
        %v291 = vmin.f32 %v258, %v264
        %v292 = vmin.f32 %v259, %v264
        %v293 = vmin.f32 %v260, %v264
        %v294 = vmin.f32 %v261, %v264
        %v295 = vmin.f32 %v262, %v264
        %v296 = vmin.f32 %v263, %v264
        %297 = vst [vmem:[%s194] sm:$0xff] %v265
        %298 = vst [vmem:[%s194 + $0x8] sm:$0xff] %v266
        %299 = vst [vmem:[%s194 + $0x10] sm:$0xff] %v267
        %300 = vst [vmem:[%s194 + $0x18] sm:$0xff] %v268
        %301 = vst [vmem:[%s194 + $0x20] sm:$0xff] %v269
        %302 = vst [vmem:[%s194 + $0x28] sm:$0xff] %v270
        %303 = vst [vmem:[%s194 + $0x30] sm:$0xff] %v271
        %304 = vst [vmem:[%s194 + $0x38] sm:$0xff] %v272
        %305 = vst [vmem:[%s194 + $0x40] sm:$0xff] %v273
        %306 = vst [vmem:[%s194 + $0x48] sm:$0xff] %v274
        %307 = vst [vmem:[%s194 + $0x50] sm:$0xff] %v275
        %308 = vst [vmem:[%s194 + $0x58] sm:$0xff] %v276
        %309 = vst [vmem:[%s194 + $0x60] sm:$0xff] %v277
        %310 = vst [vmem:[%s194 + $0x68] sm:$0xff] %v278
        %311 = vst [vmem:[%s194 + $0x70] sm:$0xff] %v279
        %312 = vst [vmem:[%s194 + $0x78] sm:$0xff] %v280
        %313 = vst [vmem:[%s194 + $0x80] sm:$0xff] %v281
        %314 = vst [vmem:[%s194 + $0x88] sm:$0xff] %v282
        %315 = vst [vmem:[%s194 + $0x90] sm:$0xff] %v283
        %316 = vst [vmem:[%s194 + $0x98] sm:$0xff] %v284
        %317 = vst [vmem:[%s194 + $0xa0] sm:$0xff] %v285
        %318 = vst [vmem:[%s194 + $0xa8] sm:$0xff] %v286
        %319 = vst [vmem:[%s194 + $0xb0] sm:$0xff] %v287
        %320 = vst [vmem:[%s194 + $0xb8] sm:$0xff] %v288
        %321 = vst [vmem:[%s194 + $0xc0] sm:$0xff] %v289
        %322 = vst [vmem:[%s194 + $0xc8] sm:$0xff] %v290
        %323 = vst [vmem:[%s194 + $0xd0] sm:$0xff] %v291
        %324 = vst [vmem:[%s194 + $0xd8] sm:$0xff] %v292
        %325 = vst [vmem:[%s194 + $0xe0] sm:$0xff] %v293
        %326 = vst [vmem:[%s194 + $0xe8] sm:$0xff] %v294
        %327 = vst [vmem:[%s194 + $0xf0] sm:$0xff] %v295
        %328 = vst [vmem:[%s194 + $0xf8] sm:$0xff] %v296
        %s329 = sand.u32 %s91, 1
        %s330 = scalar_lea.sflag [#allocation4], %s329
        %s331 = sand.u32 %s91, 1
        %s332 = smul.addr %s331, 256
        %s333 = scalar_lea.vmem [#allocation7], %s332
        // Predicated region
        $region37: #{tpu_custom_call.1} parent=27 // pred_check
          %p334 = pneg %p101
        $region38: #{tpu_custom_call.1} parent=27 // pred_check_branch
          %336 = sbr.rel (%p334) target = $region40
        $region39: #{tpu_custom_call.1} parent=27 // pred_region
          %s337 = smul.u32 32, %s24
          %339 = vsyncadd %s330, 0
          %s340 = sadd.s32 %s25, %s337
          %s341 = smul.addr %s340, 8
          %s342 = scalar_lea.hbm %s2, %s341
          %s343 = sshll.u32 %s333, 4
          %s344 = int_to_ptr.vmem [resolvable:$true] %s343
          %s345 = sshll.u32 %s342, 4
          %s346 = int_to_ptr.hbm [resolvable:$true] %s345
          %351 = dma.vmem_to_hbm [thread:$0]  %s344, 4096, %s346, %s330, 128, 128, 8
        $region40: #{tpu_custom_call.1} parent=27 // pred_fallthru
          _
      $region28: #{tpu_custom_call.1} parent=5 // pred_fallthru
        _
      %p352 = scmp.le.s32.totalorder 2, %s15
      // Predicated region
      $region41: #{tpu_custom_call.1} parent=5 // pred_check
        %p353 = pneg %p352
      $region42: #{tpu_custom_call.1} parent=5 // pred_check_branch
        %355 = sbr.rel (%p353) target = $region44
      $region43: #{tpu_custom_call.1} parent=5 // pred_region
        %s356 = ssub.s32 %s15, 2
        // Predicated region
        $region45: #{tpu_custom_call.1} parent=43 // pred_check
          %p357 = pneg %p107
        $region46: #{tpu_custom_call.1} parent=43 // pred_check_branch
          %359 = sbr.rel (%p357) target = $region48
        $region47: #{tpu_custom_call.1} parent=43 // pred_region
          %s360 = sand.u32 %s92, 1
          %s361 = scalar_lea.sflag [#allocation4], %s360
          %s362 = sand.u32 %s92, 1
          %s363 = smul.addr %s362, 256
          %s364 = scalar_lea.vmem [#allocation7], %s363
          %366 = dma.done %s361, 4096
        $region48: #{tpu_custom_call.1} parent=43 // pred_fallthru
          _
      $region44: #{tpu_custom_call.1} parent=5 // pred_fallthru
        _
    $region6: #{tpu_custom_call.1} parent=1 // loop_footer
      %s19 = sadd.s32 1, %s15
    $region7: #{tpu_custom_call.1} parent=1 // loop_footer_branch
      %14 = sbr.rel target = $region3
    $region8: #{tpu_custom_call.1} parent=1 // loop_exit
      _
    %367 = vsyncpa [#allocation3], 1
    %s368 = scalar_lea.sflag [#allocation3], 1
    %369 = vsyncpa %s368, 1
    %370 = vsyncpa [#allocation4], 1
    %s371 = scalar_lea.sflag [#allocation4], 1
    %372 = vsyncpa %s371, 1
    %373 = vsyncpa [#allocation5], 1
    %s374 = scalar_lea.sflag [#allocation5], 1
    %375 = vsyncpa %s374, 1

</llo_original>
